<compile_context>
chip_gen: v6e
topology: v6e:2x2x1
jax: 0.10.0
libtpu: 0.0.40
codegen_flags: <defaults>
</compile_context>

<pallas_src>
import functools

import jax
import jax.numpy as jnp
from jax import lax
from jax.experimental import pallas as pl
from jax.experimental.pallas import tpu as pltpu

_HIGH = lax.Precision.HIGHEST  # keep f32 matmuls exact enough for the validation below


# --------------------------------------------------------------------------- #
# helpers
# --------------------------------------------------------------------------- #
def _round_up(x, m):
    return ((x + m - 1) // m) * m


def _pick_divisor_tile(n, candidates):
    for c in candidates:
        if n % c == 0:
            return c
    return n  # fall back to the full (untiled) extent


# --------------------------------------------------------------------------- #
# Kernel 1: src-degree normalisation  h[s] = feat[s] * out_deg[s]^-1/2
# --------------------------------------------------------------------------- #
def _normalize_kernel(feat_ref, outdeg_ref, feath_ref):
    deg = jnp.maximum(outdeg_ref[...], 1.0)
    feath_ref[...] = feat_ref[...] * lax.rsqrt(deg)


def _run_normalize(feat_pad, out_deg, row_tile):
    num_src, e_pad = feat_pad.shape
    return pl.pallas_call(
        _normalize_kernel,
        out_shape=jax.ShapeDtypeStruct((num_src, e_pad), jnp.float32),
        grid_spec=pltpu.PrefetchScalarGridSpec(
            num_scalar_prefetch=0,
            grid=(num_src // row_tile,),
            in_specs=[pl.BlockSpec((row_tile, e_pad), lambda i: (i, 0)),
                      pl.BlockSpec((row_tile, 1), lambda i: (i, 0))],
            out_specs=pl.BlockSpec((row_tile, e_pad), lambda i: (i, 0)),
        ),
        compiler_params=pltpu.CompilerParams(dimension_semantics=("parallel",)),
    )(feat_pad, out_deg)


# --------------------------------------------------------------------------- #
# Kernel 2: tiled pairwise Euclidean distances (gram on the MXU, diag zeroed).
# --------------------------------------------------------------------------- #
def _dists_kernel(fi_ref, fj_ref, d_ref, *, tile):
    fi = fi_ref[...]                                          # (ts, E)
    fj = fj_ref[...]                                          # (ts, E)
    sq_i = jnp.sum(fi * fi, axis=1, keepdims=True)            # (ts, 1)
    ones = jnp.ones((1, fj.shape[1]), jnp.float32)
    sq_j = lax.dot_general(ones, fj * fj, (((1,), (1,)), ((), ())),
                           precision=_HIGH, preferred_element_type=jnp.float32)  # (1, ts)
    gram = lax.dot_general(fi, fj, (((1,), (1,)), ((), ())),
                           precision=_HIGH, preferred_element_type=jnp.float32)  # (ts, ts)
    d2 = jnp.maximum(sq_i + sq_j - 2.0 * gram, 0.0)
    # exact zero on the diagonal (cdist(X, X)[i, i] == 0); avoids cancellation noise
    r = lax.broadcasted_iota(jnp.int32, d2.shape, 0) + pl.program_id(0) * tile
    c = lax.broadcasted_iota(jnp.int32, d2.shape, 1) + pl.program_id(1) * tile
    d2 = jnp.where(r == c, 0.0, d2)
    d_ref[...] = jnp.sqrt(d2)


def _run_dists(feat_h, tile):
    num_src, e_pad = feat_h.shape
    kernel = functools.partial(_dists_kernel, tile=tile)
    return pl.pallas_call(
        kernel,
        out_shape=jax.ShapeDtypeStruct((num_src, num_src), jnp.float32),
        grid_spec=pltpu.PrefetchScalarGridSpec(
            num_scalar_prefetch=0,
            grid=(num_src // tile, num_src // tile),
            in_specs=[pl.BlockSpec((tile, e_pad), lambda i, j: (i, 0)),
                      pl.BlockSpec((tile, e_pad), lambda i, j: (j, 0))],
            out_specs=pl.BlockSpec((tile, tile), lambda i, j: (i, j)),
        ),
        compiler_params=pltpu.CompilerParams(
            dimension_semantics=("parallel", "parallel")),
    )(feat_h, feat_h)


# --------------------------------------------------------------------------- #
# Kernel 3: per-dst-tile submodular selection + fused 2-D aggregation matmul.
# --------------------------------------------------------------------------- #
def _select_aggregate_kernel(adj_ref, feat_ref, dists_ref, catneg_ref, out_ref, *rest,
                             k, sigma, emit_w):
    if emit_w:
        w_ref, wrow_scr, aggw_scr = rest
    else:
        w_ref = None
        wrow_scr, aggw_scr = rest

    f32 = jnp.float32
    adj = adj_ref[...].astype(f32)            # (T, 1, S)  neighbour mask (bf16 exact {0,1})
    feat = feat_ref[...]                      # (S, E)     normalised src features
    dists = dists_ref[...]                    # (1, S, S)  pairwise distances
    catneg = catneg_ref[...]                  # (1, 1, S)  1.0 where category == -1

    T = adj.shape[0]
    S = adj.shape[2]

    # ---- which aggregation each dst node uses (sum-all fallback vs k-selection)
    indeg = jnp.sum(adj, axis=2, keepdims=True)                              # (T,1,1)
    has_neg = (jnp.sum(adj * catneg, axis=2, keepdims=True) > 0.0).astype(f32)
    use_sum = jnp.maximum(has_neg, (indeg <= float(k)).astype(f32))          # (T,1,1)

    # ---- neighbourhood mean pairwise distance via MXU:  num = a . D . a^T
    dists_b = jnp.broadcast_to(dists, (T, S, S))
    tmp = lax.dot_general(adj, dists_b, (((2,), (1,)), ((0,), (0,))),
                          precision=_HIGH, preferred_element_type=f32)       # (T,1,S)
    num = jnp.sum(tmp * adj, axis=2, keepdims=True)                          # (T,1,1)
    inv_n2 = pl.reciprocal(jnp.maximum(indeg * indeg, 1.0), approx=False)
    mean_d = num * inv_n2
    inv_scale = pl.reciprocal(jnp.maximum(sigma * mean_d, 1e-12), approx=False)
    sims = jnp.exp(dists_b * (-inv_scale))                                   # (T,S,S): [t, j, m]

    # ---- facility-location greedy (lane-dense per-candidate vectors) -------
    iota_j = lax.broadcasted_iota(jnp.int32, (T, 1, S), 2).astype(f32)
    neg_big = f32(-1e30)

    cache = jnp.zeros((T, 1, S), f32)         # over m
    sel_cnt = jnp.zeros((T, 1, S), f32)       # over j
    for _ in range(k):                        # k is small & static -> unrolled at trace time
        inc = jnp.maximum(sims - cache, 0.0)                                 # (T,S,S)
        # gain[t,j] = sum_m adj[t,m] * inc[t,j,m]   (MXU; masks non-neighbour m)
        gain = lax.dot_general(adj, inc, (((2,), (2,)), ((0,), (0,))),
                               precision=_HIGH, preferred_element_type=f32)  # (T,1,S)
        gain = jnp.where(adj > 0.0, gain, neg_big)                           # only neighbour j
        gmax = jnp.max(gain, axis=2, keepdims=True)                          # (T,1,1)
        sel = jnp.min(jnp.where(gain == gmax, iota_j, f32(S)),
                      axis=2, keepdims=True)                                 # first argmax
        onehot = (iota_j == sel).astype(f32)                                 # (T,1,S)
        sel_cnt = sel_cnt + onehot
        # cache update with the selected similarity row sims[t, sel, :] (one-hot MXU gather)
        sel_row = lax.dot_general(onehot, sims, (((2,), (1,)), ((0,), (0,))),
                                  precision=_HIGH, preferred_element_type=f32)  # (T,1,S)
        cache = jnp.maximum(cache, sel_row)

    # ---- aggregation weights + single 2-D MXU matmul ------------------------
    agg_w = use_sum * adj + (1.0 - use_sum) * sel_cnt                        # (T,1,S)
    if emit_w:
        w_ref[...] = agg_w

    dst_scale = lax.rsqrt(jnp.maximum(indeg, 1.0))                           # (T,1,1)
    wrow_scr[...] = agg_w * dst_scale          # fold D_dst^-1/2 into the weights
    for t in range(T):                         # rank bridge (T,1,S) -> (T,S) via ref rows
        aggw_scr[pl.ds(t, 1), :] = wrow_scr[t]
    out_ref[...] = jnp.dot(aggw_scr[...], feat,
                           precision=_HIGH, preferred_element_type=f32)      # (T,E) dense


def _run_select_aggregate(adj_p, feat_h, dists, catneg, *, k, sigma, tile_dst, emit_w):
    num_dst_p, num_src = adj_p.shape
    e_pad = feat_h.shape[1]

    adj3 = adj_p.astype(jnp.bfloat16).reshape(num_dst_p, 1, num_src)  # bf16 exact for {0,1}
    dists3 = dists.reshape(1, num_src, num_src)
    catneg3 = catneg.reshape(1, 1, num_src)

    kernel = functools.partial(_select_aggregate_kernel, k=int(k), sigma=float(sigma),
                               emit_w=emit_w)

    out_shapes = [jax.ShapeDtypeStruct((num_dst_p, e_pad), jnp.float32)]
    out_specs = [pl.BlockSpec((tile_dst, e_pad), lambda i: (i, 0))]        # lane+sublane dense
    if emit_w:
        out_shapes.append(jax.ShapeDtypeStruct((num_dst_p, 1, num_src), jnp.float32))
        out_specs.append(pl.BlockSpec((tile_dst, 1, num_src), lambda i: (i, 0, 0)))

    res = pl.pallas_call(
        kernel,
        out_shape=tuple(out_shapes),
        grid_spec=pltpu.PrefetchScalarGridSpec(
            num_scalar_prefetch=0,
            grid=(num_dst_p // tile_dst,),
            in_specs=[
                pl.BlockSpec((tile_dst, 1, num_src), lambda i: (i, 0, 0)),   # adjacency rows
                pl.BlockSpec((num_src, e_pad), lambda i: (0, 0)),            # feat_h (invariant)
                pl.BlockSpec((1, num_src, num_src), lambda i: (0, 0, 0)),    # dists  (invariant)
                pl.BlockSpec((1, 1, num_src), lambda i: (0, 0, 0)),          # catneg (invariant)
            ],
            out_specs=tuple(out_specs),
            scratch_shapes=[pltpu.VMEM((tile_dst, 1, num_src), jnp.float32),
                            pltpu.VMEM((tile_dst, num_src), jnp.float32)],
        ),
        compiler_params=pltpu.CompilerParams(
            dimension_semantics=("parallel",),       # dst tiles are independent (megacore)
            vmem_limit_bytes=40 * 1024 * 1024,
        ),
    )(adj3, feat_h, dists3, catneg3)
    if emit_w:
        return res
    return res[0], None


# --------------------------------------------------------------------------- #
# wrapper
# --------------------------------------------------------------------------- #
def sub_lightgcn_forward(adj, feat_src, category, *, k, sigma, tile_dst=None,
                         return_aux=False):
    """rst = D_dst^-1/2 * Agg_submodular(A, D_src^-1/2 * feat_src)."""
    num_dst, num_src = adj.shape
    embed = feat_src.shape[1]
    e_pad = _round_up(embed, 128)                   # lane-dense embed (pad, slice after)

    adj = adj.astype(jnp.float32)
    out_deg = jnp.sum(adj, axis=0).reshape(num_src, 1)   # degrees once, in the wrapper

    feat_pad = feat_src.astype(jnp.float32)
    if e_pad != embed:
        feat_pad = jnp.pad(feat_pad, ((0, 0), (0, e_pad - embed)))

    row_tile = _pick_divisor_tile(num_src, (512, 256, 128, 64, 32, 16, 8))
    feat_h = _run_normalize(feat_pad, out_deg, row_tile)
    d_tile = _pick_divisor_tile(num_src, (256, 128))
    dists = _run_dists(feat_h, d_tile)

    # dst tile: multiple of 8 (dense output sublanes); bounded by ~3 f32 (T,S,S) temps.
    if tile_dst is None:
        budget = 16 * 1024 * 1024
        tile_dst = max(8, min(64, (budget // (12 * num_src * num_src)) // 8 * 8))
    tile_dst = _round_up(min(int(tile_dst), _round_up(num_dst, 8)), 8)
    num_dst_p = _round_up(num_dst, tile_dst)
    adj_p = jnp.pad(adj, ((0, num_dst_p - num_dst), (0, 0)))   # padded dst rows -> output 0

    catneg = (category.astype(jnp.float32) == -1.0).astype(jnp.float32)

    out2, w3 = _run_select_aggregate(adj_p, feat_h, dists, catneg,
                                     k=k, sigma=sigma, tile_dst=tile_dst,
                                     emit_w=return_aux)
    out = out2[:num_dst, :embed]
    if return_aux:
        aux = dict(feat_h=feat_h, dists=dists,
                   weights=w3[:num_dst].reshape(num_dst, num_src),
                   in_deg=jnp.sum(adj, axis=1))
        return out, aux
    return out


# --------------------------------------------------------------------------- #
# Pure-JAX reference (independent, per-destination-node formulation).
# --------------------------------------------------------------------------- #
def _reference_forward(adj, feat, category, k, sigma):
    num_dst, num_src = adj.shape
    out_deg = jnp.maximum(jnp.sum(adj, axis=0), 1.0)
    in_deg = jnp.sum(adj, axis=1)
    fh = feat * lax.rsqrt(out_deg)[:, None]
    sq = jnp.sum(fh * fh, axis=1)
    gram = jnp.dot(fh, fh.T, precision=_HIGH)
    d2 = jnp.maximum(sq[:, None] + sq[None, :] - 2.0 * gram, 0.0)
    d2 = jnp.where(jnp.eye(num_src, dtype=bool), 0.0, d2)   # cdist(X,X) diag == 0
    dists = jnp.sqrt(d2)
    cat_neg = (category == -1.0)

    def one_dst(a, n):
        has_neg = jnp.any(cat_neg & (a > 0))
        use_sum = jnp.logical_or(n <= k, has_neg)
        masked = (dists * a[None, :]) * a[:, None]
        mean_d = jnp.sum(masked) * (1.0 / jnp.maximum(n * n, 1.0))
        sims = jnp.exp(-dists * (1.0 / jnp.maximum(sigma * mean_d, 1e-12)))
        cache = jnp.zeros((num_src,), jnp.float32)
        cnt = jnp.zeros((num_src,), jnp.float32)
        for _ in range(k):
            inc = jnp.maximum(sims - cache[None, :], 0.0)
            gain = jnp.sum(inc * a[None, :], axis=1)
            gain = jnp.where(a > 0.0, gain, -1e30)
            sel = jnp.argmax(gain)
            cnt = cnt + (jnp.arange(num_src) == sel).astype(jnp.float32)
            cache = jnp.maximum(cache, sims[sel])
        w = jnp.where(use_sum, a, cnt)
        agg = jnp.dot(w, fh, precision=_HIGH)
        return agg * lax.rsqrt(jnp.maximum(n, 1.0)), w

    out, weights = jax.vmap(one_dst)(adj, in_deg)
    return out, weights, fh, dists


# --------------------------------------------------------------------------- #
if __name__ == "__main__":
    K, SIGMA = 3, 1.0                     # args.k, args.sigma (gamma/cluster_num unused)
    num_src, num_dst, embed = 64, 32, 32  # 'user' nodes, 'item' nodes, feature size

    key = jax.random.PRNGKey(0)
    k_adj, k_feat, k_cat = jax.random.split(key, 3)

    feat_user = jax.random.normal(k_feat, (num_src, embed), jnp.float32)   # h['user']
    adj = (jax.random.uniform(k_adj, (num_dst, num_src)) < 0.12).astype(jnp.float32)
    adj = adj.at[0, :].set(0.0)                                 # isolated dst -> output 0
    adj = adj.at[1, :].set(0.0).at[1, :2].set(1.0)              # deg 2 <= k -> plain-sum path
    category = jax.random.randint(k_cat, (num_src,), 0, 5).astype(jnp.float32)
    category = category.at[5].set(-1.0)                         # exercises the "-1" fallback

    out, aux = sub_lightgcn_forward(adj, feat_user, category, k=K, sigma=SIGMA,
                                    tile_dst=16, return_aux=True)
    out = jax.block_until_ready(out)

    ref_out, ref_w, ref_fh, ref_dists = _reference_forward(adj, feat_user, category, K, SIGMA)

    # 1) prep stage (normalised features + pairwise distances; diagonal exactly 0)
    assert jnp.allclose(aux["feat_h"][:, :embed], ref_fh, atol=1e-4, rtol=1e-4)
    assert jnp.allclose(aux["dists"], ref_dists, atol=1e-3, rtol=1e-3)

    # 2) aggregation-weight structure (exact, numerics-insensitive)
    w_k = aux["weights"]
    in_deg = jnp.sum(adj, axis=1)
    has_neg = (adj * (category == -1.0)[None, :]).sum(axis=1) > 0
    sum_path = jnp.logical_or(in_deg <= K, has_neg)
    assert bool(jnp.all(w_k >= 0.0))
    assert bool(jnp.all(jnp.where(sum_path[:, None], w_k == adj, True)))
    assert bool(jnp.all(jnp.where(~sum_path, jnp.sum(w_k, axis=1) == K, True)))
    assert bool(jnp.all(w_k * (1.0 - adj) == 0.0))        # selections stay inside N(d)

    # 3) greedy selection agrees with the reference on (nearly) all rows; exact float
    #    ties may legitimately resolve differently, so require a large majority.
    row_match = jnp.all(w_k == ref_w, axis=1)
    assert float(jnp.mean(row_match.astype(jnp.float32))) >= 0.8

    # 4) final output matches the reference wherever the selections agree
    ok = row_match[:, None]
    close = jnp.abs(out - ref_out) <= 2e-4 + 2e-4 * jnp.abs(ref_out)
    assert bool(jnp.all(jnp.where(ok, close, True)))

    # 5) isolated destination node -> exactly zero
    assert bool(jnp.all(out[0] == 0.0))

    print("KERNEL_OK")
</pallas_src>

<mosaic_0001>
module attributes {stable_mosaic.version = 11 : i64} {
  func.func @_normalize_kernel(%arg0: i32, %arg1: memref<64x128xf32, #tpu.memory_space<vmem>>, %arg2: memref<64x1xf32, #tpu.memory_space<vmem>>, %arg3: memref<64x128xf32, #tpu.memory_space<vmem>>) attributes {dimension_semantics = [#tpu.dimension_semantics<parallel>], iteration_bounds = array<i64: 1>, scalar_prefetch = 0 : i64, scratch_operands = 0 : i64, tpu.core_type = #tpu.core_type<tc>, window_params = [{transform_indices = @transform_0, window_bounds = array<i64: 64, 128>}, {transform_indices = @transform_1, window_bounds = array<i64: 64, 1>}, {transform_indices = @transform_2, window_bounds = array<i64: 64, 128>}]} {
    %c0 = arith.constant 0 : index
    %c0_0 = arith.constant 0 : index
    %0 = vector.load %arg2[%c0, %c0_0] : memref<64x1xf32, #tpu.memory_space<vmem>>, vector<64x1xf32>
    %cst = arith.constant 1.000000e+00 : f32
    %1 = vector.broadcast %cst : f32 to vector<64x1xf32>
    %2 = arith.maximumf %0, %1 : vector<64x1xf32>
    %c0_1 = arith.constant 0 : index
    %c0_2 = arith.constant 0 : index
    %3 = vector.load %arg1[%c0_1, %c0_2] : memref<64x128xf32, #tpu.memory_space<vmem>>, vector<64x128xf32>
    %4 = math.rsqrt %2 : vector<64x1xf32>
    %5 = vector.broadcast %4 : vector<64x1xf32> to vector<64x128xf32>
    %6 = arith.mulf %3, %5 : vector<64x128xf32>
    %c0_3 = arith.constant 0 : index
    %c0_4 = arith.constant 0 : index
    %7 = vector.load %arg3[%c0_3, %c0_4] : memref<64x128xf32, #tpu.memory_space<vmem>>, vector<64x128xf32>
    tpu.vector_store %arg3[%c0_3, %c0_4], %6 {strides = array<i32>} : memref<64x128xf32, #tpu.memory_space<vmem>>, vector<64x128xf32>,
    return
  }
  func.func @transform_0(%arg0: i32) -> (i32, i32) {
    %c0_i32 = arith.constant 0 : i32
    %c0_i32_0 = arith.constant 0 : i32
    return %arg0, %c0_i32 : i32, i32
  }
  func.func @transform_1(%arg0: i32) -> (i32, i32) {
    %c0_i32 = arith.constant 0 : i32
    %c0_i32_0 = arith.constant 0 : i32
    return %arg0, %c0_i32 : i32, i32
  }
  func.func @transform_2(%arg0: i32) -> (i32, i32) {
    %c0_i32 = arith.constant 0 : i32
    %c0_i32_0 = arith.constant 0 : i32
    return %arg0, %c0_i32 : i32, i32
  }
}

</mosaic_0001>

<llo_original>
// kernel: tpu_custom_call.1
$region0: #{tpu_custom_call.1}
  #allocation0 [shape = 'u32[]', space=smem, size = 0x4, offset = 0x4, fixed_abs, tag = 'smem constant byte address 0x4 - core index']
  #allocation1 [shape = 'u32[144,128]{1,0:T(1,128)}', space=vmem, size = 0x12000, scoped, tag = 'internal scratch']
  %s0 = inlined_call_operand.vmem [shape: f32[64,128], index: 0, kind: input, shape index: {}]
  %s1 = inlined_call_operand.vmem [shape: f32[64,1], index: 1, kind: input, shape index: {}]
  %s2 = inlined_call_operand.hbm [shape: f32[64,128], index: 2, kind: output, shape index: {}]
  %s3 = sld [smem:[#allocation0]]
  $region18: #{tpu_custom_call.1} parent=0
    _
  %s5 = ssub.s32 1, %s3
  %s6 = scalar_select 0, %s5, %s3
  $region1: #{tpu_custom_call.1} parent=0
    #allocation2 [shape = 'u8[32768]{0}', space=vmem, size = 0x8000, scoped, tag = 'output window, operand 0, single buffered']
    #allocation3 [shape = 's32[1]{0}', space=sflag, size = 0x4, scoped, tag = 'scoped memory for tpu_custom_call.1']
    %7 = vsyncpa [#allocation3], 0
    // Predicated region
    $region2: #{tpu_custom_call.1} parent=1 // pred_check
      _
    $region3: #{tpu_custom_call.1} parent=1 // pred_check_branch
      %9 = sbr.rel (0) target = $region5
    $region4: #{tpu_custom_call.1} parent=1 // pred_region
      _
    $region5: #{tpu_custom_call.1} parent=1 // pred_fallthru
      _
    // Predicated region
    $region6: #{tpu_custom_call.1} parent=1 // pred_check
      _
    $region7: #{tpu_custom_call.1} parent=1 // pred_check_branch
      %11 = sbr.rel (0) target = $region9
    $region8: #{tpu_custom_call.1} parent=1 // pred_region
      _
    $region9: #{tpu_custom_call.1} parent=1 // pred_fallthru
      _
    %v12 = vld [vmem:[%s1] sm:$0xff]
    %v13 = vld [vmem:[%s1 + $0x8] sm:$0xff]
    %v14 = vld [vmem:[%s1 + $0x10] sm:$0xff]
    %v15 = vld [vmem:[%s1 + $0x18] sm:$0xff]
    %v16 = vld [vmem:[%s1 + $0x20] sm:$0xff]
    %v17 = vld [vmem:[%s1 + $0x28] sm:$0xff]
    %v18 = vld [vmem:[%s1 + $0x30] sm:$0xff]
    %v19 = vld [vmem:[%s1 + $0x38] sm:$0xff]
    %v20 = vmax.f32 %v12, 1.0
    %v21 = vmax.f32 %v13, 1.0
    %v22 = vmax.f32 %v14, 1.0
    %v23 = vmax.f32 %v15, 1.0
    %v24 = vmax.f32 %v16, 1.0
    %v25 = vmax.f32 %v17, 1.0
    %v26 = vmax.f32 %v18, 1.0
    %v27 = vmax.f32 %v19, 1.0
    %v28 = vld [vmem:[%s0] sm:$0xff]
    %v29 = vld [vmem:[%s0 + $0x8] sm:$0xff]
    %v30 = vld [vmem:[%s0 + $0x10] sm:$0xff]
    %v31 = vld [vmem:[%s0 + $0x18] sm:$0xff]
    %v32 = vld [vmem:[%s0 + $0x20] sm:$0xff]
    %v33 = vld [vmem:[%s0 + $0x28] sm:$0xff]
    %v34 = vld [vmem:[%s0 + $0x30] sm:$0xff]
    %v35 = vld [vmem:[%s0 + $0x38] sm:$0xff]
    %v36 = vrsqrt.pop %v20
    %v37 = vrsqrt.pop %v21
    %v38 = vrsqrt.pop %v22
    %v39 = vrsqrt.pop %v23
    %v40 = vrsqrt.pop %v24
    %v41 = vrsqrt.pop %v25
    %v42 = vrsqrt.pop %v26
    %v43 = vrsqrt.pop %v27
    %45 = vset.pattern.permute.xlu0 0
    %46 = vperm.xlu0 %45, %v36
    %v47 = vpop.permute.xlu0 %46
    %50 = vset.pattern.permute.xlu0 0
    %51 = vperm.xlu0 %50, %v37
    %v52 = vpop.permute.xlu0 %51
    %55 = vset.pattern.permute.xlu0 0
    %56 = vperm.xlu0 %55, %v38
    %v57 = vpop.permute.xlu0 %56
    %60 = vset.pattern.permute.xlu0 0
    %61 = vperm.xlu0 %60, %v39
    %v62 = vpop.permute.xlu0 %61
    %65 = vset.pattern.permute.xlu0 0
    %66 = vperm.xlu0 %65, %v40
    %v67 = vpop.permute.xlu0 %66
    %70 = vset.pattern.permute.xlu0 0
    %71 = vperm.xlu0 %70, %v41
    %v72 = vpop.permute.xlu0 %71
    %75 = vset.pattern.permute.xlu0 0
    %76 = vperm.xlu0 %75, %v42
    %v77 = vpop.permute.xlu0 %76
    %80 = vset.pattern.permute.xlu0 0
    %81 = vperm.xlu0 %80, %v43
    %v82 = vpop.permute.xlu0 %81
    %v84 = vmul.f32 %v28, %v47
    %v85 = vmul.f32 %v29, %v52
    %v86 = vmul.f32 %v30, %v57
    %v87 = vmul.f32 %v31, %v62
    %v88 = vmul.f32 %v32, %v67
    %v89 = vmul.f32 %v33, %v72
    %v90 = vmul.f32 %v34, %v77
    %v91 = vmul.f32 %v35, %v82
    %92 = vst [vmem:[#allocation2] sm:$0xff] %v84
    %93 = vst [vmem:[#allocation2 + $0x8] sm:$0xff] %v85
    %94 = vst [vmem:[#allocation2 + $0x10] sm:$0xff] %v86
    %95 = vst [vmem:[#allocation2 + $0x18] sm:$0xff] %v87
    %96 = vst [vmem:[#allocation2 + $0x20] sm:$0xff] %v88
    %97 = vst [vmem:[#allocation2 + $0x28] sm:$0xff] %v89
    %98 = vst [vmem:[#allocation2 + $0x30] sm:$0xff] %v90
    %99 = vst [vmem:[#allocation2 + $0x38] sm:$0xff] %v91
    // Predicated region
    $region10: #{tpu_custom_call.1} parent=1 // pred_check
      _
    $region11: #{tpu_custom_call.1} parent=1 // pred_check_branch
      %101 = sbr.rel (0) target = $region13
    $region12: #{tpu_custom_call.1} parent=1 // pred_region
      %s103 = ssub.s32 1024, 1024
      %104 = vsyncadd [#allocation3], %s103
      %s105 = sshll.u32 [#allocation2], 4
      %s106 = int_to_ptr.vmem [resolvable:$true] %s105
      %111 = dma.vmem_to_hbm [thread:$0]  %s106, 1024, %s2, [#allocation3], 128, 128, 8
    $region13: #{tpu_custom_call.1} parent=1 // pred_fallthru
      _
    // Predicated region
    $region14: #{tpu_custom_call.1} parent=1 // pred_check
      _
    $region15: #{tpu_custom_call.1} parent=1 // pred_check_branch
      %113 = sbr.rel (0) target = $region17
    $region16: #{tpu_custom_call.1} parent=1 // pred_region
      %114 = dma.done [#allocation3], 1024
    $region17: #{tpu_custom_call.1} parent=1 // pred_fallthru
      _
    %115 = vsyncpa [#allocation3], 1

</llo_original>
